<compile_context>
chip_gen: v5e
topology: v5e:2x2
jax: 0.10.0
libtpu: 0.0.40
codegen_flags: <defaults>
</compile_context>

<pallas_src>
import math
import numpy as np
import jax
import jax.numpy as jnp
from jax import lax
from jax.experimental import pallas as pl
from jax.experimental.pallas import tpu as pltpu


def _round_up(a, b):
    return ((a + b - 1) // b) * b


# ----------------------------- Pallas kernel ------------------------------- #
def spline_conv_kernel(blk_tbl_ref, num_blk_ref, xw_ref, row_ref, w_ref,
                       deg_inv_ref, out_ref, acc_ref):
    n_tile = acc_ref.shape[0]
    n = pl.program_id(0)
    e = pl.program_id(1)

    @pl.when(e == 0)
    def _init():
        acc_ref[...] = jnp.zeros_like(acc_ref)

    # Aggregate this edge block into the resident [n_tile, P*Cin] accumulator
    # (skip steps beyond this node tile's CSR segment).
    @pl.when(e < num_blk_ref[n])
    def _accumulate():
        row_local = row_ref[...] - n * n_tile                         # [1, e_tile] int32
        node_iota = lax.broadcasted_iota(jnp.int32, (n_tile, 1), 0)   # [n_tile, 1]
        onehot = (node_iota == row_local).astype(jnp.bfloat16)        # [n_tile, e_tile]
        acc_ref[...] += jnp.dot(onehot, xw_ref[...],
                                preferred_element_type=jnp.float32)

    # Finalize: single projection GEMM, exact mean via precomputed 1/deg.
    @pl.when(e == pl.num_programs(1) - 1)
    def _finalize():
        agg = jnp.dot(acc_ref[...].astype(jnp.bfloat16), w_ref[...],
                      preferred_element_type=jnp.float32)             # [n_tile, cout_pad]
        out_ref[...] = (agg * deg_inv_ref[...]).astype(out_ref.dtype)


# -------------------------------- wrapper ---------------------------------- #
def spline_conv_pallas(x, x_col, coeff, row, weight, root_weight, bias,
                       *, n_tile=128, e_tile=2048):
    N, Cin = x.shape
    E = x_col.shape[0]
    P, _, Cout = weight.shape
    K = P * Cin

    k_pad = _round_up(K, 128)
    cout_pad = _round_up(Cout, 128)
    n_pad = _round_up(N, n_tile)
    n_tiles = n_pad // n_tile
    e_pad = _round_up(max(E, 1), e_tile)
    e_blocks = e_pad // e_tile

    # --- sort edges by target node (CSR-style segments per node tile) -------
    order = jnp.argsort(row)
    row_s = row[order].astype(jnp.int32)
    coeff_s = coeff[order]
    xcol_s = x_col[order]

    # Fused per-edge operand: xw[e, p*Cin + c] = coeff[e, p] * x_col[e, c].
    xw = (coeff_s[:, :, None] * xcol_s[:, None, :]).reshape(E, K)
    xw = jnp.pad(xw, ((0, e_pad - E), (0, k_pad - K))).astype(jnp.bfloat16)
    row_p = jnp.pad(row_s, (0, e_pad - E), constant_values=-1).reshape(1, e_pad)

    # --- host segmentation: per node tile -> [first edge block, #blocks] ----
    row_np = np.asarray(row_s)
    starts = np.searchsorted(row_np, np.arange(n_tiles) * n_tile, side="left")
    ends = np.searchsorted(row_np, (np.arange(n_tiles) + 1) * n_tile, side="left")
    blk_first = starts // e_tile
    blk_last = np.maximum(ends - 1, starts) // e_tile
    num_blk = np.where(ends > starts, blk_last - blk_first + 1, 0).astype(np.int32)
    max_blocks = int(max(int(num_blk.max()), 1))
    steps = np.arange(max_blocks)
    blk_tbl = blk_first[:, None] + np.minimum(steps[None, :],
                                              np.maximum(num_blk - 1, 0)[:, None])
    blk_tbl = np.clip(blk_tbl, 0, e_blocks - 1).astype(np.int32).reshape(-1)

    # --- exact per-node 1/deg (host/XLA) ------------------------------------
    deg = jnp.zeros((N,), jnp.float32).at[row].add(1.0)
    deg_inv = (1.0 / jnp.maximum(deg, 1.0)).reshape(N, 1)
    deg_inv = jnp.pad(deg_inv, ((0, n_pad - N), (0, 0)))

    w_flat = jnp.pad(weight.reshape(K, Cout),
                     ((0, k_pad - K), (0, cout_pad - Cout))).astype(jnp.bfloat16)

    grid = (n_tiles, max_blocks)
    total_blocks = max(int(num_blk.sum()), 1)
    flops = int(2 * n_tile * e_tile * k_pad * total_blocks      # one-hot aggregation GEMMs
                + 2 * n_pad * k_pad * cout_pad)                  # finalize projection GEMM
    bytes_accessed = int(2 * xw.size + 4 * row_p.size + 2 * w_flat.size
                         + 4 * deg_inv.size + 4 * n_pad * cout_pad)

    out_pad = pl.pallas_call(
        spline_conv_kernel,
        out_shape=jax.ShapeDtypeStruct((n_pad, cout_pad), jnp.float32),
        grid_spec=pltpu.PrefetchScalarGridSpec(
            num_scalar_prefetch=2,
            grid=grid,
            in_specs=[
                pl.BlockSpec((e_tile, k_pad),                      # xw (sorted edges)
                             lambda n, e, tbl, nb: (tbl[n * max_blocks + e], 0)),
                pl.BlockSpec((1, e_tile),                          # row indices (sorted)
                             lambda n, e, tbl, nb: (0, tbl[n * max_blocks + e])),
                pl.BlockSpec((k_pad, cout_pad),                    # W_flat (resident)
                             lambda n, e, tbl, nb: (0, 0)),
                pl.BlockSpec((n_tile, 1),                          # 1/deg (resident per tile)
                             lambda n, e, tbl, nb: (n, 0)),
            ],
            out_specs=pl.BlockSpec((n_tile, cout_pad), lambda n, e, tbl, nb: (n, 0)),
            scratch_shapes=[pltpu.VMEM((n_tile, k_pad), jnp.float32)],
        ),
        compiler_params=pltpu.CompilerParams(
            dimension_semantics=("parallel", "arbitrary"),
            vmem_limit_bytes=32 * 1024 * 1024,
        ),
        cost_estimate=pl.CostEstimate(flops=flops, transcendentals=0,
                                      bytes_accessed=bytes_accessed),
    )(jnp.asarray(blk_tbl), jnp.asarray(num_blk), xw, row_p, w_flat, deg_inv)

    # Root-weight term + bias: dense, lane-sparse K=Cin GEMM -> leave to XLA.
    out = out_pad[:N, :Cout] + x @ root_weight
    if bias is not None:
        out = out + bias
    return out


# ------------------------- B-spline basis (JAX glue) ------------------------ #
# TODO(synk): only degree=1 (linear) B-spline bases implemented (module default).
def spline_basis_linear(pseudo, kernel_size, is_open_spline):
    """pseudo: [E, D] in [0,1]. Returns basis [E, S] and weight_index [E, S], S = 2**D."""
    E, D = pseudo.shape
    ks = jnp.asarray(kernel_size, jnp.float32)
    osp = jnp.asarray(is_open_spline, jnp.float32)
    v = pseudo * (ks - osp)                 # degree = 1
    v_floor = jnp.floor(v)
    frac = v - v_floor
    vf_int = v_floor.astype(jnp.int32)

    S = 2 ** D
    bases, windex = [], []
    for s in range(S):
        b = jnp.ones((E,), pseudo.dtype)
        wi = jnp.zeros((E,), jnp.int32)
        wi_offset = 1
        for d in range(D):
            k_mod = (s >> d) & 1
            b = b * (frac[:, d] if k_mod else (1.0 - frac[:, d]))
            wi = wi + ((vf_int[:, d] + k_mod) % int(kernel_size[d])) * wi_offset
            wi_offset *= int(kernel_size[d])
        bases.append(b)
        windex.append(wi)
    return jnp.stack(bases, axis=1), jnp.stack(windex, axis=1)


# ---------------------------------- main ----------------------------------- #
if __name__ == "__main__":
    # Small synthetic graph, sized to exercise multiple node tiles and edge blocks.
    N, E = 300, 1500         # nodes, directed edges
    Cin, Cout = 8, 32        # in/out channels
    dim = 2                  # pseudo-coordinate dimensionality
    kernel_size = (4, 4)     # per-dim B-spline kernel size
    is_open_spline = (1, 1)
    P = kernel_size[0] * kernel_size[1]

    key = jax.random.PRNGKey(0)
    ks = jax.random.split(key, 7)
    row = jax.random.randint(ks[0], (E,), 0, N)                      # target node per edge
    col = jax.random.randint(ks[1], (E,), 0, N)                      # source node per edge
    pseudo = jax.random.uniform(ks[2], (E, dim), jnp.float32)        # in [0, 1]^dim
    x = jax.random.normal(ks[3], (N, Cin), jnp.float32)

    # reset_parameters(): uniform(-stdv, stdv), stdv = 1/sqrt(in_channels * prod(kernel_size))
    stdv = 1.0 / math.sqrt(Cin * P)
    weight = jax.random.uniform(ks[4], (P, Cin, Cout), jnp.float32, -stdv, stdv)
    root_weight = jax.random.uniform(ks[5], (Cin, Cout), jnp.float32, -stdv, stdv)
    bias = jax.random.uniform(ks[6], (Cout,), jnp.float32, -stdv, stdv)

    # Glue: basis + weight-index -> dense per-edge kernel coefficients, and edge gather.
    basis, windex = spline_basis_linear(pseudo, kernel_size, is_open_spline)   # [E,S], [E,S]
    coeff = jnp.zeros((E, P), jnp.float32).at[jnp.arange(E)[:, None], windex].add(basis)
    x_col = x[col]                                                             # [E, Cin]

    out = spline_conv_pallas(x, x_col, coeff, row, weight, root_weight, bias,
                             n_tile=128, e_tile=512)
    out = jax.block_until_ready(out)

    # Pure-JAX reference mirroring the kernel's bf16 MXU operand quantization
    # (aggregate-then-project; f32 accumulation in both).
    def q(a):  # bf16 round-trip
        return a.astype(jnp.bfloat16).astype(jnp.float32)

    xw_ref = q((coeff[:, :, None] * x_col[:, None, :]).reshape(E, P * Cin))
    agg_ref = jnp.zeros((N, P * Cin), jnp.float32).at[row].add(xw_ref)
    msg_ref = q(agg_ref) @ q(weight.reshape(P * Cin, Cout))
    deg_ref = jnp.zeros((N,), jnp.float32).at[row].add(1.0)
    ref = (msg_ref / jnp.maximum(deg_ref, 1.0)[:, None]
           + x @ root_weight + bias)

    assert out.shape == (N, Cout)
    assert jnp.allclose(out, ref, atol=2e-3, rtol=2e-3), "mismatch vs reference"
    print("KERNEL_OK")
</pallas_src>

<mosaic_0001>
module attributes {stable_mosaic.version = 11 : i64} {
  func.func @spline_conv_kernel(%arg0: i32, %arg1: i32, %arg2: memref<6xi32, #tpu.memory_space<smem>>, %arg3: memref<3xi32, #tpu.memory_space<smem>>, %arg4: memref<512x128xbf16, #tpu.memory_space<vmem>>, %arg5: memref<1x512xi32, #tpu.memory_space<vmem>>, %arg6: memref<128x128xbf16, #tpu.memory_space<vmem>>, %arg7: memref<128x1xf32, #tpu.memory_space<vmem>>, %arg8: memref<128x128xf32, #tpu.memory_space<vmem>>, %arg9: memref<128x128xf32, #tpu.memory_space<vmem>>) attributes {dimension_semantics = [#tpu.dimension_semantics<parallel>, #tpu.dimension_semantics<arbitrary>], iteration_bounds = array<i64: 3, 2>, scalar_prefetch = 2 : i64, scratch_operands = 1 : i64, tpu.core_type = #tpu.core_type<tc>, window_params = [{transform_indices = @transform_0, window_bounds = array<i64: 512, 128>}, {transform_indices = @transform_1, window_bounds = array<i64: 1, 512>}, {pipeline_mode = #tpu.pipeline_mode<synchronous>, transform_indices = @transform_2, window_bounds = array<i64: 128, 128>}, {transform_indices = @transform_3, window_bounds = array<i64: 128, 1>}, {transform_indices = @transform_4, window_bounds = array<i64: 128, 128>}]} {
    %c0_i32 = arith.constant 0 : i32
    %0 = arith.cmpi eq, %arg1, %c0_i32 : i32
    %1 = arith.extui %0 : i1 to i32
    %c0_i32_0 = arith.constant 0 : i32
    %2 = arith.cmpi ne, %1, %c0_i32_0 : i32
    scf.if %2 {
      %cst = arith.constant 0.000000e+00 : f32
      %11 = vector.broadcast %cst : f32 to vector<128x128xf32>
      %c0 = arith.constant 0 : index
      %c0_3 = arith.constant 0 : index
      %12 = vector.load %arg9[%c0, %c0_3] : memref<128x128xf32, #tpu.memory_space<vmem>>, vector<128x128xf32>
      tpu.vector_store %arg9[%c0, %c0_3], %11 {strides = array<i32>} : memref<128x128xf32, #tpu.memory_space<vmem>>, vector<128x128xf32>,
    } else {
    }
    %3 = arith.index_cast %arg0 : i32 to index
    %4 = memref.load %arg3[%3] : memref<3xi32, #tpu.memory_space<smem>>
    %5 = arith.cmpi slt, %arg1, %4 : i32
    %6 = arith.extui %5 : i1 to i32
    %c0_i32_1 = arith.constant 0 : i32
    %7 = arith.cmpi ne, %6, %c0_i32_1 : i32
    scf.if %7 {
      %c0 = arith.constant 0 : index
      %c0_3 = arith.constant 0 : index
      %11 = vector.load %arg5[%c0, %c0_3] : memref<1x512xi32, #tpu.memory_space<vmem>>, vector<1x512xi32>
      %c128_i32 = arith.constant 128 : i32
      %12 = arith.muli %arg0, %c128_i32 : i32
      %13 = vector.broadcast %12 : i32 to vector<1x512xi32>
      %14 = arith.subi %11, %13 : vector<1x512xi32>
      %15 = tpu.iota {dimensions = array<i32: 0>} : vector<128x1xi32>
      %16 = vector.broadcast %15 : vector<128x1xi32> to vector<128x512xi32>
      %17 = vector.broadcast %14 : vector<1x512xi32> to vector<128x512xi32>
      %18 = arith.cmpi eq, %16, %17 : vector<128x512xi32>
      %19 = arith.extui %18 : vector<128x512xi1> to vector<128x512xi32>
      %20 = arith.sitofp %19 : vector<128x512xi32> to vector<128x512xf32>
      %21 = arith.truncf %20 : vector<128x512xf32> to vector<128x512xbf16>
      %c0_4 = arith.constant 0 : index
      %c0_5 = arith.constant 0 : index
      %22 = vector.load %arg9[%c0_4, %c0_5] : memref<128x128xf32, #tpu.memory_space<vmem>>, vector<128x128xf32>
      %c0_6 = arith.constant 0 : index
      %c0_7 = arith.constant 0 : index
      %23 = vector.load %arg4[%c0_6, %c0_7] : memref<512x128xbf16, #tpu.memory_space<vmem>>, vector<512x128xbf16>
      %cst = arith.constant dense<0.000000e+00> : vector<128x128xf32>
      %24 = tpu.matmul %21, %23, %cst {dimension_numbers = #tpu.dot_dimension_numbers<[1], [0], [0], [1], [0, 0, 1, 1], [], []>} : vector<128x512xbf16>, vector<512x128xbf16>, vector<128x128xf32> -> vector<128x128xf32>
      %25 = arith.addf %22, %24 : vector<128x128xf32>
      %c0_8 = arith.constant 0 : index
      %c0_9 = arith.constant 0 : index
      %26 = vector.load %arg9[%c0_8, %c0_9] : memref<128x128xf32, #tpu.memory_space<vmem>>, vector<128x128xf32>
      tpu.vector_store %arg9[%c0_8, %c0_9], %25 {strides = array<i32>} : memref<128x128xf32, #tpu.memory_space<vmem>>, vector<128x128xf32>,
    } else {
    }
    %c1_i32 = arith.constant 1 : i32
    %8 = arith.cmpi eq, %arg1, %c1_i32 : i32
    %9 = arith.extui %8 : i1 to i32
    %c0_i32_2 = arith.constant 0 : i32
    %10 = arith.cmpi ne, %9, %c0_i32_2 : i32
    scf.if %10 {
      %c0 = arith.constant 0 : index
      %c0_3 = arith.constant 0 : index
      %11 = vector.load %arg9[%c0, %c0_3] : memref<128x128xf32, #tpu.memory_space<vmem>>, vector<128x128xf32>
      %12 = arith.truncf %11 : vector<128x128xf32> to vector<128x128xbf16>
      %c0_4 = arith.constant 0 : index
      %c0_5 = arith.constant 0 : index
      %13 = vector.load %arg6[%c0_4, %c0_5] : memref<128x128xbf16, #tpu.memory_space<vmem>>, vector<128x128xbf16>
      %cst = arith.constant dense<0.000000e+00> : vector<128x128xf32>
      %14 = tpu.matmul %12, %13, %cst {dimension_numbers = #tpu.dot_dimension_numbers<[1], [0], [0], [1], [0, 0, 1, 1], [], []>} : vector<128x128xbf16>, vector<128x128xbf16>, vector<128x128xf32> -> vector<128x128xf32>
      %c0_6 = arith.constant 0 : index
      %c0_7 = arith.constant 0 : index
      %15 = vector.load %arg7[%c0_6, %c0_7] : memref<128x1xf32, #tpu.memory_space<vmem>>, vector<128x1xf32>
      %16 = vector.broadcast %15 : vector<128x1xf32> to vector<128x128xf32>
      %17 = arith.mulf %14, %16 : vector<128x128xf32>
      %c0_8 = arith.constant 0 : index
      %c0_9 = arith.constant 0 : index
      %18 = vector.load %arg8[%c0_8, %c0_9] : memref<128x128xf32, #tpu.memory_space<vmem>>, vector<128x128xf32>
      tpu.vector_store %arg8[%c0_8, %c0_9], %17 {strides = array<i32>} : memref<128x128xf32, #tpu.memory_space<vmem>>, vector<128x128xf32>,
    } else {
    }
    return
  }
  func.func @transform_0(%arg0: i32, %arg1: i32, %arg2: memref<6xi32, #tpu.memory_space<smem>>, %arg3: memref<3xi32, #tpu.memory_space<smem>>) -> (i32, i32) {
    %c2_i32 = arith.constant 2 : i32
    %0 = arith.muli %arg0, %c2_i32 : i32
    %1 = arith.addi %0, %arg1 : i32
    %2 = arith.index_cast %1 : i32 to index
    %3 = memref.load %arg2[%2] : memref<6xi32, #tpu.memory_space<smem>>
    %c0_i32 = arith.constant 0 : i32
    %c0_i32_0 = arith.constant 0 : i32
    return %3, %c0_i32 : i32, i32
  }
  func.func @transform_1(%arg0: i32, %arg1: i32, %arg2: memref<6xi32, #tpu.memory_space<smem>>, %arg3: memref<3xi32, #tpu.memory_space<smem>>) -> (i32, i32) {
    %c2_i32 = arith.constant 2 : i32
    %0 = arith.muli %arg0, %c2_i32 : i32
    %1 = arith.addi %0, %arg1 : i32
    %2 = arith.index_cast %1 : i32 to index
    %3 = memref.load %arg2[%2] : memref<6xi32, #tpu.memory_space<smem>>
    %c0_i32 = arith.constant 0 : i32
    %c0_i32_0 = arith.constant 0 : i32
    return %c0_i32, %3 : i32, i32
  }
  func.func @transform_2(%arg0: i32, %arg1: i32, %arg2: memref<6xi32, #tpu.memory_space<smem>>, %arg3: memref<3xi32, #tpu.memory_space<smem>>) -> (i32, i32) {
    %c0_i32 = arith.constant 0 : i32
    %c0_i32_0 = arith.constant 0 : i32
    %c0_i32_1 = arith.constant 0 : i32
    return %c0_i32, %c0_i32_0 : i32, i32
  }
  func.func @transform_3(%arg0: i32, %arg1: i32, %arg2: memref<6xi32, #tpu.memory_space<smem>>, %arg3: memref<3xi32, #tpu.memory_space<smem>>) -> (i32, i32) {
    %c0_i32 = arith.constant 0 : i32
    %c0_i32_0 = arith.constant 0 : i32
    return %arg0, %c0_i32 : i32, i32
  }
  func.func @transform_4(%arg0: i32, %arg1: i32, %arg2: memref<6xi32, #tpu.memory_space<smem>>, %arg3: memref<3xi32, #tpu.memory_space<smem>>) -> (i32, i32) {
    %c0_i32 = arith.constant 0 : i32
    %c0_i32_0 = arith.constant 0 : i32
    return %arg0, %c0_i32 : i32, i32
  }
}

</mosaic_0001>

<llo_original>
// kernel: tpu_custom_call.1
$region0: #{tpu_custom_call.1}
  #allocation0 [shape = 'u32[]', space=smem, size = 0x4, offset = 0x4, fixed_abs, tag = 'smem constant byte address 0x4 - core index']
  #allocation1 [shape = 'u32[72,128]{1,0:T(1,128)}', space=vmem, size = 0x9000, scoped, tag = 'internal scratch']
  #allocation2 [shape = 'f32[128,128]{1,0:T(8,128)}', space=vmem, size = 0x10000, scoped, tag = 'scratch operand']
  #allocation3 [shape = 's32[1]{0}', space=sflag, size = 0x4, scoped, tag = 'scoped memory for tpu_custom_call.1']
  #allocation4 [shape = 'u8[512]{0}', space=smem, size = 0x200, scoped, tag = 'prefetched SMEM operand 0']
  #allocation5 [shape = 'u8[512]{0}', space=smem, size = 0x200, scoped, tag = 'prefetched SMEM operand 1']
  %s0 = inlined_call_operand.vmem [shape: s32[6], index: 0, kind: input, shape index: {}]
  %s1 = inlined_call_operand.vmem [shape: s32[3], index: 1, kind: input, shape index: {}]
  %s2 = inlined_call_operand.hbm [shape: bf16[1536,128], index: 2, kind: input, shape index: {}]
  %s3 = inlined_call_operand.vmem [shape: s32[1,1536], index: 3, kind: input, shape index: {}]
  %s4 = inlined_call_operand.vmem [shape: bf16[128,128], index: 4, kind: input, shape index: {}]
  %s5 = inlined_call_operand.vmem [shape: f32[384,1], index: 5, kind: input, shape index: {}]
  %s6 = inlined_call_operand.hbm [shape: f32[384,128], index: 6, kind: output, shape index: {}]
  %s7 = sld [smem:[#allocation0]]
  $region65: #{tpu_custom_call.1} parent=0
    _
  %s9 = ssub.s32 1, %s7
  %s10 = scalar_select 0, %s9, %s7
  %s12 = sshll.u32 %s0, 4
  %s13 = int_to_ptr.vmem [resolvable:$true] %s12
  %15 = dma.vmem_to_smem %s13, 16, [#allocation4], [#allocation3]
  %s17 = sshll.u32 %s1, 4
  %s18 = int_to_ptr.vmem [resolvable:$true] %s17
  %20 = dma.vmem_to_smem %s18, 16, [#allocation5], [#allocation3]
  %22 = dma.done [#allocation3], 32
  %23 = sfence
  $region1: #{tpu_custom_call.1} parent=0
    #allocation6 [shape = 'u8[262144]{0}', space=vmem, size = 0x40000, scoped, tag = 'input window, operand 2']
    #allocation7 [shape = 's32[2]{0}', space=sflag, size = 0x8, scoped, tag = 'scoped memory for tpu_custom_call.1']
    #allocation8 [shape = 's32[2]{0}', space=sflag, size = 0x8, scoped, tag = 'scoped memory for tpu_custom_call.1']
    #allocation9 [shape = 'u8[131072]{0}', space=vmem, size = 0x20000, scoped, tag = 'output window, operand 0']
    %24 = vsyncpa [#allocation7], 0
    %s25 = scalar_lea.sflag [#allocation7], 1
    %26 = vsyncpa %s25, 0
    %27 = vsyncpa [#allocation8], 0
    %s28 = scalar_lea.sflag [#allocation8], 1
    %29 = vsyncpa %s28, 0
    loop: start=0, step=1, limit=8
    $region2: #{tpu_custom_call.1} parent=1 // loop_pre_header
      _
    $region3: #{tpu_custom_call.1} parent=1 // loop_header
      %s31 = sphi 0, %s35
      %p32 = scmp.ge.s32.totalorder %s31, 8
      %s38 = sphi 0, %s50
      %s39 = sphi 0, %s46
      %s40 = sphi 0, %s38
      %s41 = sphi 0, %s39
      %s42 = sphi 0, %s40
      %s43 = sphi 0, %s41
      %s59 = sphi 0, %s61
      %s62 = sphi 0, %s59
      %s63 = sphi 0, %s62
      %s79 = sphi 0, %s63
      %s91 = sphi 0, %s93
      %s94 = sphi 0, %s91
      %s95 = sphi 0, %s94
      %s111 = sphi 0, %s95
      %s115 = sphi 0, %s115
      %s117 = sphi 0, %s115
      %s118 = sphi 0, %s117
      %s132 = sphi 0, %s118
      %s138 = sphi 0, %s140
      %s141 = sphi 0, %s138
      %s142 = sphi 0, %s141
      %s158 = sphi 0, %s142
      %s164 = sphi 0, %s166
      %s167 = sphi 0, %s164
      %s168 = sphi 0, %s167
      %s184 = sphi 0, %s168
    $region4: #{tpu_custom_call.1} parent=1 // loop_header_branch
      %34 = sbr.rel (%p32) target = $region8
    $region5: #{tpu_custom_call.1} parent=1 // loop_body
      %s36 = ssub.s32 %s31, 1
      %s37 = ssub.s32 %s31, 2
      %s44 = sadd.s32 1, %s39
      %p45 = scmp.ge.s32.totalorder %s44, 2
      %s46 = scalar_select %p45, 0, %s44
      %s47 = sadd.s32 1, %s38
      %s48 = scalar_select %p45, %s47, %s38
      %p49 = scmp.ge.s32.totalorder %s48, 3
      %s50 = scalar_select %p49, 0, %s48
      %s51 = smul.u32 %s38, 2
      %s52 = sadd.s32 %s51, %s39
      %s53 = sld [smem:[#allocation4 + %s52]]
      %s54 = smul.u32 %s50, 2
      %s55 = sadd.s32 %s54, %s46
      %s56 = sld [smem:[#allocation4 + %s55]]
      %s57 = ssub.s32 %s53, %s56
      %p58 = scmp.eq.s32.totalorder %s57, 0
      %s60 = sadd.s32 %s59, 1
      %s61 = scalar_select %p58, %s59, %s60
      %p64 = pneg %p58
      %p65 = scmp.eq.s32.totalorder %s31, 5
      %p66 = por %p64, %p65
      %p67 = scmp.ne.s32.totalorder %s59, %s62
      %p68 = scmp.eq.s32.totalorder %s31, 0
      %p69 = por %p67, %p68
      %p70 = scmp.ne.s32.totalorder %s59, %s62
      %p71 = scmp.eq.s32.totalorder %s36, 5
      %p72 = por %p70, %p71
      %p73 = scmp.ne.s32.totalorder %s62, %s63
      %p74 = scmp.eq.s32.totalorder %s36, 0
      %p75 = por %p73, %p74
      %p76 = scmp.ne.s32.totalorder %s62, %s63
      %p77 = scmp.eq.s32.totalorder %s37, 5
      %p78 = por %p76, %p77
      %p80 = scmp.ne.s32.totalorder %s63, %s79
      %p81 = scmp.eq.s32.totalorder %s37, 0
      %p82 = por %p80, %p81
      %s83 = smul.u32 %s38, 2
      %s84 = sadd.s32 %s83, %s39
      %s85 = sld [smem:[#allocation4 + %s84]]
      %s86 = smul.u32 %s50, 2
      %s87 = sadd.s32 %s86, %s46
      %s88 = sld [smem:[#allocation4 + %s87]]
      %s89 = ssub.s32 %s85, %s88
      %p90 = scmp.eq.s32.totalorder %s89, 0
      %s92 = sadd.s32 %s91, 1
      %s93 = scalar_select %p90, %s91, %s92
      %p96 = pneg %p90
      %p97 = scmp.eq.s32.totalorder %s31, 5
      %p98 = por %p96, %p97
      %p99 = scmp.ne.s32.totalorder %s91, %s94
      %p100 = scmp.eq.s32.totalorder %s31, 0
      %p101 = por %p99, %p100
      %p102 = scmp.ne.s32.totalorder %s91, %s94
      %p103 = scmp.eq.s32.totalorder %s36, 5
      %p104 = por %p102, %p103
      %p105 = scmp.ne.s32.totalorder %s94, %s95
      %p106 = scmp.eq.s32.totalorder %s36, 0
      %p107 = por %p105, %p106
      %p108 = scmp.ne.s32.totalorder %s94, %s95
      %p109 = scmp.eq.s32.totalorder %s37, 5
      %p110 = por %p108, %p109
      %p112 = scmp.ne.s32.totalorder %s95, %s111
      %p113 = scmp.eq.s32.totalorder %s37, 0
      %p114 = por %p112, %p113
      %s116 = sadd.s32 %s115, 1
      %p119 = scmp.eq.s32.totalorder %s31, 5
      %p120 = scmp.ne.s32.totalorder %s115, %s117
      %p121 = scmp.eq.s32.totalorder %s31, 0
      %p122 = por %p120, %p121
      %p123 = scmp.ne.s32.totalorder %s115, %s117
      %p124 = scmp.eq.s32.totalorder %s36, 5
      %p125 = por %p123, %p124
      %p126 = scmp.ne.s32.totalorder %s117, %s118
      %p127 = scmp.eq.s32.totalorder %s36, 0
      %p128 = por %p126, %p127
      %p129 = scmp.ne.s32.totalorder %s117, %s118
      %p130 = scmp.eq.s32.totalorder %s37, 5
      %p131 = por %p129, %p130
      %p133 = scmp.ne.s32.totalorder %s118, %s132
      %p134 = scmp.eq.s32.totalorder %s37, 0
      %p135 = por %p133, %p134
      %s136 = ssub.s32 %s38, %s50
      %p137 = scmp.eq.s32.totalorder %s136, 0
      %s139 = sadd.s32 %s138, 1
      %s140 = scalar_select %p137, %s138, %s139
      %p143 = pneg %p137
      %p144 = scmp.eq.s32.totalorder %s31, 5
      %p145 = por %p143, %p144
      %p146 = scmp.ne.s32.totalorder %s138, %s141
      %p147 = scmp.eq.s32.totalorder %s31, 0
      %p148 = por %p146, %p147
      %p149 = scmp.ne.s32.totalorder %s138, %s141
      %p150 = scmp.eq.s32.totalorder %s36, 5
      %p151 = por %p149, %p150
      %p152 = scmp.ne.s32.totalorder %s141, %s142
      %p153 = scmp.eq.s32.totalorder %s36, 0
      %p154 = por %p152, %p153
      %p155 = scmp.ne.s32.totalorder %s141, %s142
      %p156 = scmp.eq.s32.totalorder %s37, 5
      %p157 = por %p155, %p156
      %p159 = scmp.ne.s32.totalorder %s142, %s158
      %p160 = scmp.eq.s32.totalorder %s37, 0
      %p161 = por %p159, %p160
      %s162 = ssub.s32 %s38, %s50
      %p163 = scmp.eq.s32.totalorder %s162, 0
      %s165 = sadd.s32 %s164, 1
      %s166 = scalar_select %p163, %s164, %s165
      %p169 = pneg %p163
      %p170 = scmp.eq.s32.totalorder %s31, 5
      %p171 = por %p169, %p170
      %p172 = scmp.ne.s32.totalorder %s164, %s167
      %p173 = scmp.eq.s32.totalorder %s31, 0
      %p174 = por %p172, %p173
      %p175 = scmp.ne.s32.totalorder %s164, %s167
      %p176 = scmp.eq.s32.totalorder %s36, 5
      %p177 = por %p175, %p176
      %p178 = scmp.ne.s32.totalorder %s167, %s168
      %p179 = scmp.eq.s32.totalorder %s36, 0
      %p180 = por %p178, %p179
      %p181 = scmp.ne.s32.totalorder %s167, %s168
      %p182 = scmp.eq.s32.totalorder %s37, 5
      %p183 = por %p181, %p182
      %p185 = scmp.ne.s32.totalorder %s168, %s184
      %p186 = scmp.eq.s32.totalorder %s37, 0
      %p187 = por %p185, %p186
      %p188 = scmp.le.s32.totalorder 1, %s31
      %p189 = scmp.lt.s32.totalorder %s31, 7
      %p190 = pnand %p188, %p189
      %p191 = pneg %p190
      // Predicated region
      $region9: #{tpu_custom_call.1} parent=5 // pred_check
        _
      $region10: #{tpu_custom_call.1} parent=5 // pred_check_branch
        %193 = sbr.rel (%p190) target = $region12
      $region11: #{tpu_custom_call.1} parent=5 // pred_region
        %s194 = ssub.s32 %s31, 1
        // Predicated region
        $region13: #{tpu_custom_call.1} parent=11 // pred_check
          %p195 = pneg %p128
        $region14: #{tpu_custom_call.1} parent=11 // pred_check_branch
          %197 = sbr.rel (%p195) target = $region16
        $region15: #{tpu_custom_call.1} parent=11 // pred_region
          _
        $region16: #{tpu_custom_call.1} parent=11 // pred_fallthru
          _
      $region12: #{tpu_custom_call.1} parent=5 // pred_fallthru
        _
      %p198 = scmp.lt.s32.totalorder %s31, 6
      // Predicated region
      $region17: #{tpu_custom_call.1} parent=5 // pred_check
        %p199 = pneg %p198
      $region18: #{tpu_custom_call.1} parent=5 // pred_check_branch
        %201 = sbr.rel (%p199) target = $region20
      $region19: #{tpu_custom_call.1} parent=5 // pred_region
        // Predicated region
        $region21: #{tpu_custom_call.1} parent=19 // pred_check
          %p202 = pneg %p69
        $region22: #{tpu_custom_call.1} parent=19 // pred_check_branch
          %204 = sbr.rel (%p202) target = $region24
        $region23: #{tpu_custom_call.1} parent=19 // pred_region
          %s205 = sand.u32 %s59, 1
          %s206 = scalar_lea.sflag [#allocation7], %s205
          %s207 = sand.u32 %s59, 1
          %s208 = smul.addr %s207, 256
          %s209 = scalar_lea.vmem [#allocation6], %s208
          %s210 = smul.u32 %s38, 2
          %s211 = sadd.s32 %s210, %s39
          %s212 = sld [smem:[#allocation4 + %s211]]
          %s213 = smul.u32 64, %s212
          %215 = vsyncadd %s206, 0
          %s216 = smul.addr %s213, 4
          %s217 = scalar_lea.hbm %s2, %s216
          %s218 = sshll.u32 %s217, 4
          %s219 = int_to_ptr.hbm [resolvable:$true] %s218
          %s220 = sshll.u32 %s209, 4
          %s221 = int_to_ptr.vmem [resolvable:$true] %s220
          %226 = dma.hbm_to_vmem [thread:$0]  %s219, 4096, %s221, %s206, 64, 64, 4
        $region24: #{tpu_custom_call.1} parent=19 // pred_fallthru
          _
        // Predicated region
        $region25: #{tpu_custom_call.1} parent=19 // pred_check
          %p227 = pneg %p101
        $region26: #{tpu_custom_call.1} parent=19 // pred_check_branch
          %229 = sbr.rel (%p227) target = $region28
        $region27: #{tpu_custom_call.1} parent=19 // pred_region
          %s230 = smul.u32 %s38, 2
          %s231 = sadd.s32 %s230, %s39
          %s232 = sld [smem:[#allocation4 + %s231]]
          %s233 = smul.u32 4, %s232
          %p234 = scmp.lt.s32.totalorder %s233, 11
          %s235 = scalar_select %p234, %s233, 11
          %s236 = scalar_lea.vmem %s3, %s235
          %s237 = smul.u32 %s38, 2
          %s238 = sadd.s32 %s237, %s39
          %s239 = sld [smem:[#allocation4 + %s238]]
          %s240 = smul.u32 4, %s239
        $region28: #{tpu_custom_call.1} parent=19 // pred_fallthru
          _
        // Predicated region
        $region29: #{tpu_custom_call.1} parent=19 // pred_check
          %p241 = pneg %p148
        $region30: #{tpu_custom_call.1} parent=19 // pred_check_branch
          %243 = sbr.rel (%p241) target = $region32
        $region31: #{tpu_custom_call.1} parent=19 // pred_region
          %s244 = smul.u32 16, %s38
          %p245 = scmp.lt.s32.totalorder %s244, 47
          %s246 = scalar_select %p245, %s244, 47
          %s247 = smul.addr %s246, 8
          %s248 = scalar_lea.vmem %s5, %s247
          %s249 = smul.u32 16, %s38
        $region32: #{tpu_custom_call.1} parent=19 // pred_fallthru
          _
      $region20: #{tpu_custom_call.1} parent=5 // pred_fallthru
        _
      %p250 = scmp.le.s32.totalorder 1, %s31
      %p251 = scmp.lt.s32.totalorder %s31, 7
      %p252 = pnand %p250, %p251
      %p253 = pneg %p252
      // Predicated region
      $region33: #{tpu_custom_call.1} parent=5 // pred_check
        _
      $region34: #{tpu_custom_call.1} parent=5 // pred_check_branch
        %255 = sbr.rel (%p252) target = $region36
      $region35: #{tpu_custom_call.1} parent=5 // pred_region
        %s256 = ssub.s32 %s31, 1
        %s257 = sand.u32 %s62, 1
        %s258 = scalar_lea.sflag [#allocation7], %s257
        %s259 = sand.u32 %s62, 1
        %s260 = smul.addr %s259, 256
        %s261 = scalar_lea.vmem [#allocation6], %s260
        // Predicated region
        $region37: #{tpu_custom_call.1} parent=35 // pred_check
          %p262 = pneg %p75
        $region38: #{tpu_custom_call.1} parent=35 // pred_check_branch
          %264 = sbr.rel (%p262) target = $region40
        $region39: #{tpu_custom_call.1} parent=35 // pred_region
          %266 = dma.done %s258, 4096
        $region40: #{tpu_custom_call.1} parent=35 // pred_fallthru
          _
        %s267 = sand.u32 %s62, 1
        %s268 = scalar_lea.sflag [#allocation7], %s267
        %s269 = sand.u32 %s62, 1
        %s270 = smul.addr %s269, 256
        %s271 = scalar_lea.vmem [#allocation6], %s270
        %p272 = pneg %p75
        %p273 = pneg %p72
        %s274 = smul.u32 %s40, 2
        %s275 = sadd.s32 %s274, %s41
        %s276 = sld [smem:[#allocation4 + %s275]]
        %s277 = smul.u32 4, %s276
        %p278 = scmp.lt.s32.totalorder %s277, 11
        %s279 = scalar_select %p278, %s277, 11
        %s280 = scalar_lea.vmem %s3, %s279
        %p281 = pneg %p107
        %p282 = pneg %p104
        %p283 = pneg %p128
        %p284 = pneg %p125
        %s285 = smul.u32 16, %s40
        %p286 = scmp.lt.s32.totalorder %s285, 47
        %s287 = scalar_select %p286, %s285, 47
        %s288 = smul.addr %s287, 8
        %s289 = scalar_lea.vmem %s5, %s288
        %p290 = pneg %p154
        %p291 = pneg %p151
        %p292 = pneg %p180
        %p293 = pneg %p177
        %s294 = sand.u32 %s167, 1
        %s295 = scalar_lea.sflag [#allocation8], %s294
        %s296 = sand.u32 %s167, 1
        %s297 = smul.addr %s296, 128
        %s298 = scalar_lea.vmem [#allocation9], %s297
        %s299 = smul.u32 %s40, 2
        %s300 = sadd.s32 %s299, %s41
        %s301 = sld [smem:[#allocation4 + %s300]]
        %s302 = smul.u32 64, %s301
        %s303 = smul.u32 %s40, 2
        %s304 = sadd.s32 %s303, %s41
        %s305 = sld [smem:[#allocation4 + %s304]]
        %s306 = smul.u32 4, %s305
        %p307 = scmp.lt.s32.totalorder %s306, 11
        %s308 = scalar_select %p307, %s306, 11
        %s309 = scalar_lea.vmem %s3, %s308
        %s310 = smul.u32 %s40, 2
        %s311 = sadd.s32 %s310, %s41
        %s312 = sld [smem:[#allocation4 + %s311]]
        %s313 = smul.u32 4, %s312
        %s314 = smul.u32 16, %s40
        %p315 = scmp.lt.s32.totalorder %s314, 47
        %s316 = scalar_select %p315, %s314, 47
        %s317 = smul.addr %s316, 8
        %s318 = scalar_lea.vmem %s5, %s317
        %s319 = smul.u32 16, %s40
        %s320 = smul.u32 16, %s40
        %p321 = scmp.eq.s32.totalorder %s41, 0
        // Predicated region
        $region41: #{tpu_custom_call.1} parent=35 // pred_check
          %p322 = pneg %p321
        $region42: #{tpu_custom_call.1} parent=35 // pred_check_branch
          %324 = sbr.rel (%p322) target = $region44
        $region43: #{tpu_custom_call.1} parent=35 // pred_region
          %325 = vst [vmem:[#allocation2] sm:$0xff] 0.0
          %326 = vst [vmem:[#allocation2 + $0x8] sm:$0xff] 0.0
          %327 = vst [vmem:[#allocation2 + $0x10] sm:$0xff] 0.0
          %328 = vst [vmem:[#allocation2 + $0x18] sm:$0xff] 0.0
          %329 = vst [vmem:[#allocation2 + $0x20] sm:$0xff] 0.0
          %330 = vst [vmem:[#allocation2 + $0x28] sm:$0xff] 0.0
          %331 = vst [vmem:[#allocation2 + $0x30] sm:$0xff] 0.0
          %332 = vst [vmem:[#allocation2 + $0x38] sm:$0xff] 0.0
          %333 = vst [vmem:[#allocation2 + $0x40] sm:$0xff] 0.0
          %334 = vst [vmem:[#allocation2 + $0x48] sm:$0xff] 0.0
          %335 = vst [vmem:[#allocation2 + $0x50] sm:$0xff] 0.0
          %336 = vst [vmem:[#allocation2 + $0x58] sm:$0xff] 0.0
          %337 = vst [vmem:[#allocation2 + $0x60] sm:$0xff] 0.0
          %338 = vst [vmem:[#allocation2 + $0x68] sm:$0xff] 0.0
          %339 = vst [vmem:[#allocation2 + $0x70] sm:$0xff] 0.0
          %340 = vst [vmem:[#allocation2 + $0x78] sm:$0xff] 0.0
        $region44: #{tpu_custom_call.1} parent=35 // pred_fallthru
          _
        %s341 = sld [smem:[#allocation5 + %s40]]
        %p342 = scmp.lt.s32.totalorder %s41, %s341
        // Predicated region
        $region45: #{tpu_custom_call.1} parent=35 // pred_check
          %p343 = pneg %p342
        $region46: #{tpu_custom_call.1} parent=35 // pred_check_branch
          %345 = sbr.rel (%p343) target = $region48
        $region47: #{tpu_custom_call.1} parent=35 // pred_region
          %v346 = vld [vmem:[%s309] sm:$0xf]
          %s347 = smul.u32 %s40, 128
          %v348 = vstv %s347
          %v349 = vsub.s32 %v346, %v348
          %v350 = vlaneseq
          %v351 = vshrl.u32 %v350, 7
          %v352 = vadd.s32 %v351, 8
          %v353 = vadd.s32 %v351, 16
          %v354 = vadd.s32 %v351, 24
          %v355 = vadd.s32 %v351, 32
          %v356 = vadd.s32 %v351, 40
          %v357 = vadd.s32 %v351, 48
          %v358 = vadd.s32 %v351, 56
          %v359 = vadd.s32 %v351, 64
          %v360 = vadd.s32 %v351, 72
          %v361 = vadd.s32 %v351, 80
          %v362 = vadd.s32 %v351, 88
          %v363 = vadd.s32 %v351, 96
          %v364 = vadd.s32 %v351, 104
          %v365 = vadd.s32 %v351, 112
          %v366 = vadd.s32 %v351, 120
          %v367 = vperm.slane %v349, 0
          %v368 = vperm.slane %v349, 1
          %v369 = vperm.slane %v349, 2
          %v370 = vperm.slane %v349, 3
          %vm371 = vcmp.eq.s32.totalorder %v351, %v367
          %vm372 = vcmp.eq.s32.totalorder %v351, %v368
          %vm373 = vcmp.eq.s32.totalorder %v351, %v369
          %vm374 = vcmp.eq.s32.totalorder %v351, %v370
          %vm375 = vcmp.eq.s32.totalorder %v352, %v367
          %vm376 = vcmp.eq.s32.totalorder %v352, %v368
          %vm377 = vcmp.eq.s32.totalorder %v352, %v369
          %vm378 = vcmp.eq.s32.totalorder %v352, %v370
          %vm379 = vcmp.eq.s32.totalorder %v353, %v367
          %vm380 = vcmp.eq.s32.totalorder %v353, %v368
          %vm381 = vcmp.eq.s32.totalorder %v353, %v369
          %vm382 = vcmp.eq.s32.totalorder %v353, %v370
          %vm383 = vcmp.eq.s32.totalorder %v354, %v367
          %vm384 = vcmp.eq.s32.totalorder %v354, %v368
          %vm385 = vcmp.eq.s32.totalorder %v354, %v369
          %vm386 = vcmp.eq.s32.totalorder %v354, %v370
          %vm387 = vcmp.eq.s32.totalorder %v355, %v367
          %vm388 = vcmp.eq.s32.totalorder %v355, %v368
          %vm389 = vcmp.eq.s32.totalorder %v355, %v369
          %vm390 = vcmp.eq.s32.totalorder %v355, %v370
          %vm391 = vcmp.eq.s32.totalorder %v356, %v367
          %vm392 = vcmp.eq.s32.totalorder %v356, %v368
          %vm393 = vcmp.eq.s32.totalorder %v356, %v369
          %vm394 = vcmp.eq.s32.totalorder %v356, %v370
          %vm395 = vcmp.eq.s32.totalorder %v357, %v367
          %vm396 = vcmp.eq.s32.totalorder %v357, %v368
          %vm397 = vcmp.eq.s32.totalorder %v357, %v369
          %vm398 = vcmp.eq.s32.totalorder %v357, %v370
          %vm399 = vcmp.eq.s32.totalorder %v358, %v367
          %vm400 = vcmp.eq.s32.totalorder %v358, %v368
          %vm401 = vcmp.eq.s32.totalorder %v358, %v369
          %vm402 = vcmp.eq.s32.totalorder %v358, %v370
          %vm403 = vcmp.eq.s32.totalorder %v359, %v367
          %vm404 = vcmp.eq.s32.totalorder %v359, %v368
          %vm405 = vcmp.eq.s32.totalorder %v359, %v369
          %vm406 = vcmp.eq.s32.totalorder %v359, %v370
          %vm407 = vcmp.eq.s32.totalorder %v360, %v367
          %vm408 = vcmp.eq.s32.totalorder %v360, %v368
          %vm409 = vcmp.eq.s32.totalorder %v360, %v369
          %vm410 = vcmp.eq.s32.totalorder %v360, %v370
          %vm411 = vcmp.eq.s32.totalorder %v361, %v367
          %vm412 = vcmp.eq.s32.totalorder %v361, %v368
          %vm413 = vcmp.eq.s32.totalorder %v361, %v369
          %vm414 = vcmp.eq.s32.totalorder %v361, %v370
          %vm415 = vcmp.eq.s32.totalorder %v362, %v367
          %vm416 = vcmp.eq.s32.totalorder %v362, %v368
          %vm417 = vcmp.eq.s32.totalorder %v362, %v369
          %vm418 = vcmp.eq.s32.totalorder %v362, %v370
          %vm419 = vcmp.eq.s32.totalorder %v363, %v367
          %vm420 = vcmp.eq.s32.totalorder %v363, %v368
          %vm421 = vcmp.eq.s32.totalorder %v363, %v369
          %vm422 = vcmp.eq.s32.totalorder %v363, %v370
          %vm423 = vcmp.eq.s32.totalorder %v364, %v367
          %vm424 = vcmp.eq.s32.totalorder %v364, %v368
          %vm425 = vcmp.eq.s32.totalorder %v364, %v369
          %vm426 = vcmp.eq.s32.totalorder %v364, %v370
          %vm427 = vcmp.eq.s32.totalorder %v365, %v367
          %vm428 = vcmp.eq.s32.totalorder %v365, %v368
          %vm429 = vcmp.eq.s32.totalorder %v365, %v369
          %vm430 = vcmp.eq.s32.totalorder %v365, %v370
          %vm431 = vcmp.eq.s32.totalorder %v366, %v367
          %vm432 = vcmp.eq.s32.totalorder %v366, %v368
          %vm433 = vcmp.eq.s32.totalorder %v366, %v369
          %vm434 = vcmp.eq.s32.totalorder %v366, %v370
          %v435 = vsel %vm371, 1, 0
          %v436 = vsel %vm372, 1, 0
          %v437 = vsel %vm373, 1, 0
          %v438 = vsel %vm374, 1, 0
          %v439 = vsel %vm375, 1, 0
          %v440 = vsel %vm376, 1, 0
          %v441 = vsel %vm377, 1, 0
          %v442 = vsel %vm378, 1, 0
          %v443 = vsel %vm379, 1, 0
          %v444 = vsel %vm380, 1, 0
          %v445 = vsel %vm381, 1, 0
          %v446 = vsel %vm382, 1, 0
          %v447 = vsel %vm383, 1, 0
          %v448 = vsel %vm384, 1, 0
          %v449 = vsel %vm385, 1, 0
          %v450 = vsel %vm386, 1, 0
          %v451 = vsel %vm387, 1, 0
          %v452 = vsel %vm388, 1, 0
          %v453 = vsel %vm389, 1, 0
          %v454 = vsel %vm390, 1, 0
          %v455 = vsel %vm391, 1, 0
          %v456 = vsel %vm392, 1, 0
          %v457 = vsel %vm393, 1, 0
          %v458 = vsel %vm394, 1, 0
          %v459 = vsel %vm395, 1, 0
          %v460 = vsel %vm396, 1, 0
          %v461 = vsel %vm397, 1, 0
          %v462 = vsel %vm398, 1, 0
          %v463 = vsel %vm399, 1, 0
          %v464 = vsel %vm400, 1, 0
          %v465 = vsel %vm401, 1, 0
          %v466 = vsel %vm402, 1, 0
          %v467 = vsel %vm403, 1, 0
          %v468 = vsel %vm404, 1, 0
          %v469 = vsel %vm405, 1, 0
          %v470 = vsel %vm406, 1, 0
          %v471 = vsel %vm407, 1, 0
          %v472 = vsel %vm408, 1, 0
          %v473 = vsel %vm409, 1, 0
          %v474 = vsel %vm410, 1, 0
          %v475 = vsel %vm411, 1, 0
          %v476 = vsel %vm412, 1, 0
          %v477 = vsel %vm413, 1, 0
          %v478 = vsel %vm414, 1, 0
          %v479 = vsel %vm415, 1, 0
          %v480 = vsel %vm416, 1, 0
          %v481 = vsel %vm417, 1, 0
          %v482 = vsel %vm418, 1, 0
          %v483 = vsel %vm419, 1, 0
          %v484 = vsel %vm420, 1, 0
          %v485 = vsel %vm421, 1, 0
          %v486 = vsel %vm422, 1, 0
          %v487 = vsel %vm423, 1, 0
          %v488 = vsel %vm424, 1, 0
          %v489 = vsel %vm425, 1, 0
          %v490 = vsel %vm426, 1, 0
          %v491 = vsel %vm427, 1, 0
          %v492 = vsel %vm428, 1, 0
          %v493 = vsel %vm429, 1, 0
          %v494 = vsel %vm430, 1, 0
          %v495 = vsel %vm431, 1, 0
          %v496 = vsel %vm432, 1, 0
          %v497 = vsel %vm433, 1, 0
          %v498 = vsel %vm434, 1, 0
          %v499 = vcvt.s32.f32 %v435
          %v500 = vcvt.s32.f32 %v436
          %v501 = vcvt.s32.f32 %v437
          %v502 = vcvt.s32.f32 %v438
          %v503 = vcvt.s32.f32 %v439
          %v504 = vcvt.s32.f32 %v440
          %v505 = vcvt.s32.f32 %v441
          %v506 = vcvt.s32.f32 %v442
          %v507 = vcvt.s32.f32 %v443
          %v508 = vcvt.s32.f32 %v444
          %v509 = vcvt.s32.f32 %v445
          %v510 = vcvt.s32.f32 %v446
          %v511 = vcvt.s32.f32 %v447
          %v512 = vcvt.s32.f32 %v448
          %v513 = vcvt.s32.f32 %v449
          %v514 = vcvt.s32.f32 %v450
          %v515 = vcvt.s32.f32 %v451
          %v516 = vcvt.s32.f32 %v452
          %v517 = vcvt.s32.f32 %v453
          %v518 = vcvt.s32.f32 %v454
          %v519 = vcvt.s32.f32 %v455
          %v520 = vcvt.s32.f32 %v456
          %v521 = vcvt.s32.f32 %v457
          %v522 = vcvt.s32.f32 %v458
          %v523 = vcvt.s32.f32 %v459
          %v524 = vcvt.s32.f32 %v460
          %v525 = vcvt.s32.f32 %v461
          %v526 = vcvt.s32.f32 %v462
          %v527 = vcvt.s32.f32 %v463
          %v528 = vcvt.s32.f32 %v464
          %v529 = vcvt.s32.f32 %v465
          %v530 = vcvt.s32.f32 %v466
          %v531 = vcvt.s32.f32 %v467
          %v532 = vcvt.s32.f32 %v468
          %v533 = vcvt.s32.f32 %v469
          %v534 = vcvt.s32.f32 %v470
          %v535 = vcvt.s32.f32 %v471
          %v536 = vcvt.s32.f32 %v472
          %v537 = vcvt.s32.f32 %v473
          %v538 = vcvt.s32.f32 %v474
          %v539 = vcvt.s32.f32 %v475
          %v540 = vcvt.s32.f32 %v476
          %v541 = vcvt.s32.f32 %v477
          %v542 = vcvt.s32.f32 %v478
          %v543 = vcvt.s32.f32 %v479
          %v544 = vcvt.s32.f32 %v480
          %v545 = vcvt.s32.f32 %v481
          %v546 = vcvt.s32.f32 %v482
          %v547 = vcvt.s32.f32 %v483
          %v548 = vcvt.s32.f32 %v484
          %v549 = vcvt.s32.f32 %v485
          %v550 = vcvt.s32.f32 %v486
          %v551 = vcvt.s32.f32 %v487
          %v552 = vcvt.s32.f32 %v488
          %v553 = vcvt.s32.f32 %v489
          %v554 = vcvt.s32.f32 %v490
          %v555 = vcvt.s32.f32 %v491
          %v556 = vcvt.s32.f32 %v492
          %v557 = vcvt.s32.f32 %v493
          %v558 = vcvt.s32.f32 %v494
          %v559 = vcvt.s32.f32 %v495
          %v560 = vcvt.s32.f32 %v496
          %v561 = vcvt.s32.f32 %v497
          %v562 = vcvt.s32.f32 %v498
          %v563 = vpack.c.bf16 %v503, %v499
          %v564 = vpack.c.bf16 %v504, %v500
          %v565 = vpack.c.bf16 %v505, %v501
          %v566 = vpack.c.bf16 %v506, %v502
          %v567 = vpack.c.bf16 %v511, %v507
          %v568 = vpack.c.bf16 %v512, %v508
          %v569 = vpack.c.bf16 %v513, %v509
          %v570 = vpack.c.bf16 %v514, %v510
          %v571 = vpack.c.bf16 %v519, %v515
          %v572 = vpack.c.bf16 %v520, %v516
          %v573 = vpack.c.bf16 %v521, %v517
          %v574 = vpack.c.bf16 %v522, %v518
          %v575 = vpack.c.bf16 %v527, %v523
          %v576 = vpack.c.bf16 %v528, %v524
          %v577 = vpack.c.bf16 %v529, %v525
          %v578 = vpack.c.bf16 %v530, %v526
          %v579 = vpack.c.bf16 %v535, %v531
          %v580 = vpack.c.bf16 %v536, %v532
          %v581 = vpack.c.bf16 %v537, %v533
          %v582 = vpack.c.bf16 %v538, %v534
          %v583 = vpack.c.bf16 %v543, %v539
          %v584 = vpack.c.bf16 %v544, %v540
          %v585 = vpack.c.bf16 %v545, %v541
          %v586 = vpack.c.bf16 %v546, %v542
          %v587 = vpack.c.bf16 %v551, %v547
          %v588 = vpack.c.bf16 %v552, %v548
          %v589 = vpack.c.bf16 %v553, %v549
          %v590 = vpack.c.bf16 %v554, %v550
          %v591 = vpack.c.bf16 %v559, %v555
          %v592 = vpack.c.bf16 %v560, %v556
          %v593 = vpack.c.bf16 %v561, %v557
          %v594 = vpack.c.bf16 %v562, %v558
          %v595 = vld [vmem:[#allocation2] sm:$0xff]
          %v596 = vld [vmem:[#allocation2 + $0x8] sm:$0xff]
          %v597 = vld [vmem:[#allocation2 + $0x10] sm:$0xff]
          %v598 = vld [vmem:[#allocation2 + $0x18] sm:$0xff]
          %v599 = vld [vmem:[#allocation2 + $0x20] sm:$0xff]
          %v600 = vld [vmem:[#allocation2 + $0x28] sm:$0xff]
          %v601 = vld [vmem:[#allocation2 + $0x30] sm:$0xff]
          %v602 = vld [vmem:[#allocation2 + $0x38] sm:$0xff]
          %v603 = vld [vmem:[#allocation2 + $0x40] sm:$0xff]
          %v604 = vld [vmem:[#allocation2 + $0x48] sm:$0xff]
          %v605 = vld [vmem:[#allocation2 + $0x50] sm:$0xff]
          %v606 = vld [vmem:[#allocation2 + $0x58] sm:$0xff]
          %v607 = vld [vmem:[#allocation2 + $0x60] sm:$0xff]
          %v608 = vld [vmem:[#allocation2 + $0x68] sm:$0xff]
          %v609 = vld [vmem:[#allocation2 + $0x70] sm:$0xff]
          %v610 = vld [vmem:[#allocation2 + $0x78] sm:$0xff]
          %v611 = vld [vmem:[%s261] sm:$0xf]
          %v612 = vld [vmem:[%s261 + $0x4] sm:$0xf]
          %v613 = vld [vmem:[%s261 + $0x8] sm:$0xf]
          %v614 = vld [vmem:[%s261 + $0xc] sm:$0xf]
          %v615 = vld [vmem:[%s261 + $0x10] sm:$0xf]
          %v616 = vld [vmem:[%s261 + $0x14] sm:$0xf]
          %v617 = vld [vmem:[%s261 + $0x18] sm:$0xf]
          %v618 = vld [vmem:[%s261 + $0x1c] sm:$0xf]
          %v619 = vld [vmem:[%s261 + $0x20] sm:$0xf]
          %v620 = vld [vmem:[%s261 + $0x24] sm:$0xf]
          %v621 = vld [vmem:[%s261 + $0x28] sm:$0xf]
          %v622 = vld [vmem:[%s261 + $0x2c] sm:$0xf]
          %v623 = vld [vmem:[%s261 + $0x30] sm:$0xf]
          %v624 = vld [vmem:[%s261 + $0x34] sm:$0xf]
          %v625 = vld [vmem:[%s261 + $0x38] sm:$0xf]
          %v626 = vld [vmem:[%s261 + $0x3c] sm:$0xf]
          %v627 = vld [vmem:[%s261 + $0x40] sm:$0xf]
          %v628 = vld [vmem:[%s261 + $0x44] sm:$0xf]
          %v629 = vld [vmem:[%s261 + $0x48] sm:$0xf]
          %v630 = vld [vmem:[%s261 + $0x4c] sm:$0xf]
          %v631 = vld [vmem:[%s261 + $0x50] sm:$0xf]
          %v632 = vld [vmem:[%s261 + $0x54] sm:$0xf]
          %v633 = vld [vmem:[%s261 + $0x58] sm:$0xf]
          %v634 = vld [vmem:[%s261 + $0x5c] sm:$0xf]
          %v635 = vld [vmem:[%s261 + $0x60] sm:$0xf]
          %v636 = vld [vmem:[%s261 + $0x64] sm:$0xf]
          %v637 = vld [vmem:[%s261 + $0x68] sm:$0xf]
          %v638 = vld [vmem:[%s261 + $0x6c] sm:$0xf]
          %v639 = vld [vmem:[%s261 + $0x70] sm:$0xf]
          %v640 = vld [vmem:[%s261 + $0x74] sm:$0xf]
          %v641 = vld [vmem:[%s261 + $0x78] sm:$0xf]
          %v642 = vld [vmem:[%s261 + $0x7c] sm:$0xf]
          %v643 = vld [vmem:[%s261 + $0x80] sm:$0xf]
          %v644 = vld [vmem:[%s261 + $0x84] sm:$0xf]
          %v645 = vld [vmem:[%s261 + $0x88] sm:$0xf]
          %v646 = vld [vmem:[%s261 + $0x8c] sm:$0xf]
          %v647 = vld [vmem:[%s261 + $0x90] sm:$0xf]
          %v648 = vld [vmem:[%s261 + $0x94] sm:$0xf]
          %v649 = vld [vmem:[%s261 + $0x98] sm:$0xf]
          %v650 = vld [vmem:[%s261 + $0x9c] sm:$0xf]
          %v651 = vld [vmem:[%s261 + $0xa0] sm:$0xf]
          %v652 = vld [vmem:[%s261 + $0xa4] sm:$0xf]
          %v653 = vld [vmem:[%s261 + $0xa8] sm:$0xf]
          %v654 = vld [vmem:[%s261 + $0xac] sm:$0xf]
          %v655 = vld [vmem:[%s261 + $0xb0] sm:$0xf]
          %v656 = vld [vmem:[%s261 + $0xb4] sm:$0xf]
          %v657 = vld [vmem:[%s261 + $0xb8] sm:$0xf]
          %v658 = vld [vmem:[%s261 + $0xbc] sm:$0xf]
          %v659 = vld [vmem:[%s261 + $0xc0] sm:$0xf]
          %v660 = vld [vmem:[%s261 + $0xc4] sm:$0xf]
          %v661 = vld [vmem:[%s261 + $0xc8] sm:$0xf]
          %v662 = vld [vmem:[%s261 + $0xcc] sm:$0xf]
          %v663 = vld [vmem:[%s261 + $0xd0] sm:$0xf]
          %v664 = vld [vmem:[%s261 + $0xd4] sm:$0xf]
          %v665 = vld [vmem:[%s261 + $0xd8] sm:$0xf]
          %v666 = vld [vmem:[%s261 + $0xdc] sm:$0xf]
          %v667 = vld [vmem:[%s261 + $0xe0] sm:$0xf]
          %v668 = vld [vmem:[%s261 + $0xe4] sm:$0xf]
          %v669 = vld [vmem:[%s261 + $0xe8] sm:$0xf]
          %v670 = vld [vmem:[%s261 + $0xec] sm:$0xf]
          %v671 = vld [vmem:[%s261 + $0xf0] sm:$0xf]
          %v672 = vld [vmem:[%s261 + $0xf4] sm:$0xf]
          %v673 = vld [vmem:[%s261 + $0xf8] sm:$0xf]
          %v674 = vld [vmem:[%s261 + $0xfc] sm:$0xf]
          %v739 = vunpack.c.l.b16 %v611
          %v740 = vunpack.c.l.b16 %v612
          %v741 = vunpack.c.l.b16 %v613
          %v742 = vunpack.c.l.b16 %v614
          %v743 = vunpack.c.l.b16 %v615
          %v744 = vunpack.c.l.b16 %v616
          %v745 = vunpack.c.l.b16 %v617
          %v746 = vunpack.c.l.b16 %v618
          %v747 = vunpack.c.l.b16 %v619
          %v748 = vunpack.c.l.b16 %v620
          %v749 = vunpack.c.l.b16 %v621
          %v750 = vunpack.c.l.b16 %v622
          %v751 = vunpack.c.l.b16 %v623
          %v752 = vunpack.c.l.b16 %v624
          %v753 = vunpack.c.l.b16 %v625
          %v754 = vunpack.c.l.b16 %v626
          %v755 = vunpack.c.l.b16 %v627
          %v756 = vunpack.c.l.b16 %v628
          %v757 = vunpack.c.l.b16 %v629
          %v758 = vunpack.c.l.b16 %v630
          %v759 = vunpack.c.l.b16 %v631
          %v760 = vunpack.c.l.b16 %v632
          %v761 = vunpack.c.l.b16 %v633
          %v762 = vunpack.c.l.b16 %v634
          %v763 = vunpack.c.l.b16 %v635
          %v764 = vunpack.c.l.b16 %v636
          %v765 = vunpack.c.l.b16 %v637
          %v766 = vunpack.c.l.b16 %v638
          %v767 = vunpack.c.l.b16 %v639
          %v768 = vunpack.c.l.b16 %v640
          %v769 = vunpack.c.l.b16 %v641
          %v770 = vunpack.c.l.b16 %v642
          %v771 = vunpack.c.l.b16 %v643
          %v772 = vunpack.c.l.b16 %v644
          %v773 = vunpack.c.l.b16 %v645
          %v774 = vunpack.c.l.b16 %v646
          %v775 = vunpack.c.l.b16 %v647
          %v776 = vunpack.c.l.b16 %v648
          %v777 = vunpack.c.l.b16 %v649
          %v778 = vunpack.c.l.b16 %v650
          %v779 = vunpack.c.l.b16 %v651
          %v780 = vunpack.c.l.b16 %v652
          %v781 = vunpack.c.l.b16 %v653
          %v782 = vunpack.c.l.b16 %v654
          %v783 = vunpack.c.l.b16 %v655
          %v784 = vunpack.c.l.b16 %v656
          %v785 = vunpack.c.l.b16 %v657
          %v786 = vunpack.c.l.b16 %v658
          %v787 = vunpack.c.l.b16 %v659
          %v788 = vunpack.c.l.b16 %v660
          %v789 = vunpack.c.l.b16 %v661
          %v790 = vunpack.c.l.b16 %v662
          %v791 = vunpack.c.l.b16 %v663
          %v792 = vunpack.c.l.b16 %v664
          %v793 = vunpack.c.l.b16 %v665
          %v794 = vunpack.c.l.b16 %v666
          %v795 = vunpack.c.l.b16 %v667
          %v796 = vunpack.c.l.b16 %v668
          %v797 = vunpack.c.l.b16 %v669
          %v798 = vunpack.c.l.b16 %v670
          %v799 = vunpack.c.l.b16 %v671
          %v800 = vunpack.c.l.b16 %v672
          %v801 = vunpack.c.l.b16 %v673
          %v802 = vunpack.c.l.b16 %v674
          %v803 = vpack.c.b16 %v740, %v739
          %v804 = vpack.c.b16 %v742, %v741
          %v805 = vpack.c.b16 %v744, %v743
          %v806 = vpack.c.b16 %v746, %v745
          %v807 = vpack.c.b16 %v748, %v747
          %v808 = vpack.c.b16 %v750, %v749
          %v809 = vpack.c.b16 %v752, %v751
          %v810 = vpack.c.b16 %v754, %v753
          %v811 = vpack.c.b16 %v756, %v755
          %v812 = vpack.c.b16 %v758, %v757
          %v813 = vpack.c.b16 %v760, %v759
          %v814 = vpack.c.b16 %v762, %v761
          %v815 = vpack.c.b16 %v764, %v763
          %v816 = vpack.c.b16 %v766, %v765
          %v817 = vpack.c.b16 %v768, %v767
          %v818 = vpack.c.b16 %v770, %v769
          %v819 = vpack.c.b16 %v772, %v771
          %v820 = vpack.c.b16 %v774, %v773
          %v821 = vpack.c.b16 %v776, %v775
          %v822 = vpack.c.b16 %v778, %v777
          %v823 = vpack.c.b16 %v780, %v779
          %v824 = vpack.c.b16 %v782, %v781
          %v825 = vpack.c.b16 %v784, %v783
          %v826 = vpack.c.b16 %v786, %v785
          %v827 = vpack.c.b16 %v788, %v787
          %v828 = vpack.c.b16 %v790, %v789
          %v829 = vpack.c.b16 %v792, %v791
          %v830 = vpack.c.b16 %v794, %v793
          %v831 = vpack.c.b16 %v796, %v795
          %v832 = vpack.c.b16 %v798, %v797
          %v833 = vpack.c.b16 %v800, %v799
          %v834 = vpack.c.b16 %v802, %v801
          %867 = vmatpush.bf16.msra.mxu0 %v810
          %868 = vmatpush.bf16.msra.mxu0 %v809
          %869 = vmatpush.bf16.msra.mxu0 %v808
          %870 = vmatpush.bf16.msra.mxu0 %v807
          %871 = vmatpush.bf16.msra.mxu0 %v806
          %872 = vmatpush.bf16.msra.mxu0 %v805
          %873 = vmatpush.bf16.msra.mxu0 %v804
          %874 = vmatpush.bf16.msra.mxu0 %v803
          %875 = vmatmul.bf16.gmra.mxu0 %v563
          %v876 = vpop.f32.mrf.mxu0
          %v877 = vadd.f32 0.0, %v876
          %v878 = vpop.f32.mrf.mxu0
          %v879 = vadd.f32 0.0, %v878
          %880 = vmatmul.bf16.gmra.mxu0 %v567
          %v881 = vpop.f32.mrf.mxu0
          %v882 = vadd.f32 0.0, %v881
          %v883 = vpop.f32.mrf.mxu0
          %v884 = vadd.f32 0.0, %v883
          %885 = vmatmul.bf16.gmra.mxu0 %v571
          %v886 = vpop.f32.mrf.mxu0
          %v887 = vadd.f32 0.0, %v886
          %v888 = vpop.f32.mrf.mxu0
          %v889 = vadd.f32 0.0, %v888
          %890 = vmatmul.bf16.gmra.mxu0 %v575
          %v891 = vpop.f32.mrf.mxu0
          %v892 = vadd.f32 0.0, %v891
          %v893 = vpop.f32.mrf.mxu0
          %v894 = vadd.f32 0.0, %v893
          %895 = vmatmul.bf16.gmra.mxu0 %v579
          %v896 = vpop.f32.mrf.mxu0
          %v897 = vadd.f32 0.0, %v896
          %v898 = vpop.f32.mrf.mxu0
          %v899 = vadd.f32 0.0, %v898
          %900 = vmatmul.bf16.gmra.mxu0 %v583
          %v901 = vpop.f32.mrf.mxu0
          %v902 = vadd.f32 0.0, %v901
          %v903 = vpop.f32.mrf.mxu0
          %v904 = vadd.f32 0.0, %v903
          %905 = vmatmul.bf16.gmra.mxu0 %v587
          %v906 = vpop.f32.mrf.mxu0
          %v907 = vadd.f32 0.0, %v906
          %v908 = vpop.f32.mrf.mxu0
          %v909 = vadd.f32 0.0, %v908
          %910 = vmatmul.bf16.gmra.mxu0 %v591
          %v911 = vpop.f32.mrf.mxu0
          %v912 = vadd.f32 0.0, %v911
          %v913 = vpop.f32.mrf.mxu0
          %v914 = vadd.f32 0.0, %v913
          %915 = vdwg.mxu0
          %916 = vmatpush.bf16.msra.mxu0 %v818
          %917 = vmatpush.bf16.msra.mxu0 %v817
          %918 = vmatpush.bf16.msra.mxu0 %v816
          %919 = vmatpush.bf16.msra.mxu0 %v815
          %920 = vmatpush.bf16.msra.mxu0 %v814
          %921 = vmatpush.bf16.msra.mxu0 %v813
          %922 = vmatpush.bf16.msra.mxu0 %v812
          %923 = vmatpush.bf16.msra.mxu0 %v811
          %924 = vmatmul.bf16.gmra.mxu0 %v564
          %v925 = vpop.f32.mrf.mxu0
          %v926 = vadd.f32 %v877, %v925
          %v927 = vpop.f32.mrf.mxu0
          %v928 = vadd.f32 %v879, %v927
          %929 = vmatmul.bf16.gmra.mxu0 %v568
          %v930 = vpop.f32.mrf.mxu0
          %v931 = vadd.f32 %v882, %v930
          %v932 = vpop.f32.mrf.mxu0
          %v933 = vadd.f32 %v884, %v932
          %934 = vmatmul.bf16.gmra.mxu0 %v572
          %v935 = vpop.f32.mrf.mxu0
          %v936 = vadd.f32 %v887, %v935
          %v937 = vpop.f32.mrf.mxu0
          %v938 = vadd.f32 %v889, %v937
          %939 = vmatmul.bf16.gmra.mxu0 %v576
          %v940 = vpop.f32.mrf.mxu0
          %v941 = vadd.f32 %v892, %v940
          %v942 = vpop.f32.mrf.mxu0
          %v943 = vadd.f32 %v894, %v942
          %944 = vmatmul.bf16.gmra.mxu0 %v580
          %v945 = vpop.f32.mrf.mxu0
          %v946 = vadd.f32 %v897, %v945
          %v947 = vpop.f32.mrf.mxu0
          %v948 = vadd.f32 %v899, %v947
          %949 = vmatmul.bf16.gmra.mxu0 %v584
          %v950 = vpop.f32.mrf.mxu0
          %v951 = vadd.f32 %v902, %v950
          %v952 = vpop.f32.mrf.mxu0
          %v953 = vadd.f32 %v904, %v952
          %954 = vmatmul.bf16.gmra.mxu0 %v588
          %v955 = vpop.f32.mrf.mxu0
          %v956 = vadd.f32 %v907, %v955
          %v957 = vpop.f32.mrf.mxu0
          %v958 = vadd.f32 %v909, %v957
          %959 = vmatmul.bf16.gmra.mxu0 %v592
          %v960 = vpop.f32.mrf.mxu0
          %v961 = vadd.f32 %v912, %v960
          %v962 = vpop.f32.mrf.mxu0
          %v963 = vadd.f32 %v914, %v962
          %964 = vdwg.mxu0
          %965 = vmatpush.bf16.msra.mxu0 %v826
          %966 = vmatpush.bf16.msra.mxu0 %v825
          %967 = vmatpush.bf16.msra.mxu0 %v824
          %968 = vmatpush.bf16.msra.mxu0 %v823
          %969 = vmatpush.bf16.msra.mxu0 %v822
          %970 = vmatpush.bf16.msra.mxu0 %v821
          %971 = vmatpush.bf16.msra.mxu0 %v820
          %972 = vmatpush.bf16.msra.mxu0 %v819
          %973 = vmatmul.bf16.gmra.mxu0 %v565
          %v974 = vpop.f32.mrf.mxu0
          %v975 = vadd.f32 %v926, %v974
          %v976 = vpop.f32.mrf.mxu0
          %v977 = vadd.f32 %v928, %v976
          %978 = vmatmul.bf16.gmra.mxu0 %v569
          %v979 = vpop.f32.mrf.mxu0
          %v980 = vadd.f32 %v931, %v979
          %v981 = vpop.f32.mrf.mxu0
          %v982 = vadd.f32 %v933, %v981
          %983 = vmatmul.bf16.gmra.mxu0 %v573
          %v984 = vpop.f32.mrf.mxu0
          %v985 = vadd.f32 %v936, %v984
          %v986 = vpop.f32.mrf.mxu0
          %v987 = vadd.f32 %v938, %v986
          %988 = vmatmul.bf16.gmra.mxu0 %v577
          %v989 = vpop.f32.mrf.mxu0
          %v990 = vadd.f32 %v941, %v989
          %v991 = vpop.f32.mrf.mxu0
          %v992 = vadd.f32 %v943, %v991
          %993 = vmatmul.bf16.gmra.mxu0 %v581
          %v994 = vpop.f32.mrf.mxu0
          %v995 = vadd.f32 %v946, %v994
          %v996 = vpop.f32.mrf.mxu0
          %v997 = vadd.f32 %v948, %v996
          %998 = vmatmul.bf16.gmra.mxu0 %v585
          %v999 = vpop.f32.mrf.mxu0
          %v1000 = vadd.f32 %v951, %v999
          %v1001 = vpop.f32.mrf.mxu0
          %v1002 = vadd.f32 %v953, %v1001
          %1003 = vmatmul.bf16.gmra.mxu0 %v589
          %v1004 = vpop.f32.mrf.mxu0
          %v1005 = vadd.f32 %v956, %v1004
          %v1006 = vpop.f32.mrf.mxu0
          %v1007 = vadd.f32 %v958, %v1006
          %1008 = vmatmul.bf16.gmra.mxu0 %v593
          %v1009 = vpop.f32.mrf.mxu0
          %v1010 = vadd.f32 %v961, %v1009
          %v1011 = vpop.f32.mrf.mxu0
          %v1012 = vadd.f32 %v963, %v1011
          %1013 = vdwg.mxu0
          %1014 = vmatpush.bf16.msra.mxu0 %v834
          %1015 = vmatpush.bf16.msra.mxu0 %v833
          %1016 = vmatpush.bf16.msra.mxu0 %v832
          %1017 = vmatpush.bf16.msra.mxu0 %v831
          %1018 = vmatpush.bf16.msra.mxu0 %v830
          %1019 = vmatpush.bf16.msra.mxu0 %v829
          %1020 = vmatpush.bf16.msra.mxu0 %v828
          %1021 = vmatpush.bf16.msra.mxu0 %v827
          %1022 = vmatmul.bf16.gmra.mxu0 %v566
          %v1023 = vpop.f32.mrf.mxu0
          %v1024 = vadd.f32 %v975, %v1023
          %v1025 = vpop.f32.mrf.mxu0
          %v1026 = vadd.f32 %v977, %v1025
          %1027 = vmatmul.bf16.gmra.mxu0 %v570
          %v1028 = vpop.f32.mrf.mxu0
          %v1029 = vadd.f32 %v980, %v1028
          %v1030 = vpop.f32.mrf.mxu0
          %v1031 = vadd.f32 %v982, %v1030
          %1032 = vmatmul.bf16.gmra.mxu0 %v574
          %v1033 = vpop.f32.mrf.mxu0
          %v1034 = vadd.f32 %v985, %v1033
          %v1035 = vpop.f32.mrf.mxu0
          %v1036 = vadd.f32 %v987, %v1035
          %1037 = vmatmul.bf16.gmra.mxu0 %v578
          %v1038 = vpop.f32.mrf.mxu0
          %v1039 = vadd.f32 %v990, %v1038
          %v1040 = vpop.f32.mrf.mxu0
          %v1041 = vadd.f32 %v992, %v1040
          %1042 = vmatmul.bf16.gmra.mxu0 %v582
          %v1043 = vpop.f32.mrf.mxu0
          %v1044 = vadd.f32 %v995, %v1043
          %v1045 = vpop.f32.mrf.mxu0
          %v1046 = vadd.f32 %v997, %v1045
          %1047 = vmatmul.bf16.gmra.mxu0 %v586
          %v1048 = vpop.f32.mrf.mxu0
          %v1049 = vadd.f32 %v1000, %v1048
          %v1050 = vpop.f32.mrf.mxu0
          %v1051 = vadd.f32 %v1002, %v1050
          %1052 = vmatmul.bf16.gmra.mxu0 %v590
          %v1053 = vpop.f32.mrf.mxu0
          %v1054 = vadd.f32 %v1005, %v1053
          %v1055 = vpop.f32.mrf.mxu0
          %v1056 = vadd.f32 %v1007, %v1055
          %1057 = vmatmul.bf16.gmra.mxu0 %v594
          %v1058 = vpop.f32.mrf.mxu0
          %v1059 = vadd.f32 %v1010, %v1058
          %v1060 = vpop.f32.mrf.mxu0
          %v1061 = vadd.f32 %v1012, %v1060
          %1062 = vdwg.mxu0
          %v1063 = vadd.f32 %v595, %v1024
          %v1064 = vadd.f32 %v596, %v1026
          %v1065 = vadd.f32 %v597, %v1029
          %v1066 = vadd.f32 %v598, %v1031
          %v1067 = vadd.f32 %v599, %v1034
          %v1068 = vadd.f32 %v600, %v1036
          %v1069 = vadd.f32 %v601, %v1039
          %v1070 = vadd.f32 %v602, %v1041
          %v1071 = vadd.f32 %v603, %v1044
          %v1072 = vadd.f32 %v604, %v1046
          %v1073 = vadd.f32 %v605, %v1049
          %v1074 = vadd.f32 %v606, %v1051
          %v1075 = vadd.f32 %v607, %v1054
          %v1076 = vadd.f32 %v608, %v1056
          %v1077 = vadd.f32 %v609, %v1059
          %v1078 = vadd.f32 %v610, %v1061
          %1079 = vst [vmem:[#allocation2] sm:$0xff] %v1063
          %1080 = vst [vmem:[#allocation2 + $0x8] sm:$0xff] %v1064
          %1081 = vst [vmem:[#allocation2 + $0x10] sm:$0xff] %v1065
          %1082 = vst [vmem:[#allocation2 + $0x18] sm:$0xff] %v1066
          %1083 = vst [vmem:[#allocation2 + $0x20] sm:$0xff] %v1067
          %1084 = vst [vmem:[#allocation2 + $0x28] sm:$0xff] %v1068
          %1085 = vst [vmem:[#allocation2 + $0x30] sm:$0xff] %v1069
          %1086 = vst [vmem:[#allocation2 + $0x38] sm:$0xff] %v1070
          %1087 = vst [vmem:[#allocation2 + $0x40] sm:$0xff] %v1071
          %1088 = vst [vmem:[#allocation2 + $0x48] sm:$0xff] %v1072
          %1089 = vst [vmem:[#allocation2 + $0x50] sm:$0xff] %v1073
          %1090 = vst [vmem:[#allocation2 + $0x58] sm:$0xff] %v1074
          %1091 = vst [vmem:[#allocation2 + $0x60] sm:$0xff] %v1075
          %1092 = vst [vmem:[#allocation2 + $0x68] sm:$0xff] %v1076
          %1093 = vst [vmem:[#allocation2 + $0x70] sm:$0xff] %v1077
          %1094 = vst [vmem:[#allocation2 + $0x78] sm:$0xff] %v1078
        $region48: #{tpu_custom_call.1} parent=35 // pred_fallthru
          _
        %p1095 = scmp.eq.s32.totalorder %s41, 1
        // Predicated region
        $region49: #{tpu_custom_call.1} parent=35 // pred_check
          %p1096 = pneg %p1095
        $region50: #{tpu_custom_call.1} parent=35 // pred_check_branch
          %1098 = sbr.rel (%p1096) target = $region52
        $region51: #{tpu_custom_call.1} parent=35 // pred_region
          %v1099 = vld [vmem:[#allocation2] sm:$0xff]
          %v1100 = vld [vmem:[#allocation2 + $0x8] sm:$0xff]
          %v1101 = vld [vmem:[#allocation2 + $0x10] sm:$0xff]
          %v1102 = vld [vmem:[#allocation2 + $0x18] sm:$0xff]
          %v1103 = vld [vmem:[#allocation2 + $0x20] sm:$0xff]
          %v1104 = vld [vmem:[#allocation2 + $0x28] sm:$0xff]
          %v1105 = vld [vmem:[#allocation2 + $0x30] sm:$0xff]
          %v1106 = vld [vmem:[#allocation2 + $0x38] sm:$0xff]
          %v1107 = vld [vmem:[#allocation2 + $0x40] sm:$0xff]
          %v1108 = vld [vmem:[#allocation2 + $0x48] sm:$0xff]
          %v1109 = vld [vmem:[#allocation2 + $0x50] sm:$0xff]
          %v1110 = vld [vmem:[#allocation2 + $0x58] sm:$0xff]
          %v1111 = vld [vmem:[#allocation2 + $0x60] sm:$0xff]
          %v1112 = vld [vmem:[#allocation2 + $0x68] sm:$0xff]
          %v1113 = vld [vmem:[#allocation2 + $0x70] sm:$0xff]
          %v1114 = vld [vmem:[#allocation2 + $0x78] sm:$0xff]
          %v1115 = vpack.c.bf16 %v1100, %v1099
          %v1116 = vpack.c.bf16 %v1102, %v1101
          %v1117 = vpack.c.bf16 %v1104, %v1103
          %v1118 = vpack.c.bf16 %v1106, %v1105
          %v1119 = vpack.c.bf16 %v1108, %v1107
          %v1120 = vpack.c.bf16 %v1110, %v1109
          %v1121 = vpack.c.bf16 %v1112, %v1111
          %v1122 = vpack.c.bf16 %v1114, %v1113
          %v1123 = vld [vmem:[%s4] sm:$0xf]
          %v1124 = vld [vmem:[%s4 + $0x4] sm:$0xf]
          %v1125 = vld [vmem:[%s4 + $0x8] sm:$0xf]
          %v1126 = vld [vmem:[%s4 + $0xc] sm:$0xf]
          %v1127 = vld [vmem:[%s4 + $0x10] sm:$0xf]
          %v1128 = vld [vmem:[%s4 + $0x14] sm:$0xf]
          %v1129 = vld [vmem:[%s4 + $0x18] sm:$0xf]
          %v1130 = vld [vmem:[%s4 + $0x1c] sm:$0xf]
          %v1131 = vld [vmem:[%s4 + $0x20] sm:$0xf]
          %v1132 = vld [vmem:[%s4 + $0x24] sm:$0xf]
          %v1133 = vld [vmem:[%s4 + $0x28] sm:$0xf]
          %v1134 = vld [vmem:[%s4 + $0x2c] sm:$0xf]
          %v1135 = vld [vmem:[%s4 + $0x30] sm:$0xf]
          %v1136 = vld [vmem:[%s4 + $0x34] sm:$0xf]
          %v1137 = vld [vmem:[%s4 + $0x38] sm:$0xf]
          %v1138 = vld [vmem:[%s4 + $0x3c] sm:$0xf]
          %v1155 = vunpack.c.l.b16 %v1123
          %v1156 = vunpack.c.l.b16 %v1124
          %v1157 = vunpack.c.l.b16 %v1125
          %v1158 = vunpack.c.l.b16 %v1126
          %v1159 = vunpack.c.l.b16 %v1127
          %v1160 = vunpack.c.l.b16 %v1128
          %v1161 = vunpack.c.l.b16 %v1129
          %v1162 = vunpack.c.l.b16 %v1130
          %v1163 = vunpack.c.l.b16 %v1131
          %v1164 = vunpack.c.l.b16 %v1132
          %v1165 = vunpack.c.l.b16 %v1133
          %v1166 = vunpack.c.l.b16 %v1134
          %v1167 = vunpack.c.l.b16 %v1135
          %v1168 = vunpack.c.l.b16 %v1136
          %v1169 = vunpack.c.l.b16 %v1137
          %v1170 = vunpack.c.l.b16 %v1138
          %v1171 = vpack.c.b16 %v1156, %v1155
          %v1172 = vpack.c.b16 %v1158, %v1157
          %v1173 = vpack.c.b16 %v1160, %v1159
          %v1174 = vpack.c.b16 %v1162, %v1161
          %v1175 = vpack.c.b16 %v1164, %v1163
          %v1176 = vpack.c.b16 %v1166, %v1165
          %v1177 = vpack.c.b16 %v1168, %v1167
          %v1178 = vpack.c.b16 %v1170, %v1169
          %1187 = vmatpush.bf16.msra.mxu0 %v1178
          %1188 = vmatpush.bf16.msra.mxu0 %v1177
          %1189 = vmatpush.bf16.msra.mxu0 %v1176
          %1190 = vmatpush.bf16.msra.mxu0 %v1175
          %1191 = vmatpush.bf16.msra.mxu0 %v1174
          %1192 = vmatpush.bf16.msra.mxu0 %v1173
          %1193 = vmatpush.bf16.msra.mxu0 %v1172
          %1194 = vmatpush.bf16.msra.mxu0 %v1171
          %1195 = vmatmul.bf16.gmra.mxu0 %v1115
          %v1196 = vpop.f32.mrf.mxu0
          %v1197 = vadd.f32 0.0, %v1196
          %v1198 = vpop.f32.mrf.mxu0
          %v1199 = vadd.f32 0.0, %v1198
          %1200 = vmatmul.bf16.gmra.mxu0 %v1116
          %v1201 = vpop.f32.mrf.mxu0
          %v1202 = vadd.f32 0.0, %v1201
          %v1203 = vpop.f32.mrf.mxu0
          %v1204 = vadd.f32 0.0, %v1203
          %1205 = vmatmul.bf16.gmra.mxu0 %v1117
          %v1206 = vpop.f32.mrf.mxu0
          %v1207 = vadd.f32 0.0, %v1206
          %v1208 = vpop.f32.mrf.mxu0
          %v1209 = vadd.f32 0.0, %v1208
          %1210 = vmatmul.bf16.gmra.mxu0 %v1118
          %v1211 = vpop.f32.mrf.mxu0
          %v1212 = vadd.f32 0.0, %v1211
          %v1213 = vpop.f32.mrf.mxu0
          %v1214 = vadd.f32 0.0, %v1213
          %1215 = vmatmul.bf16.gmra.mxu0 %v1119
          %v1216 = vpop.f32.mrf.mxu0
          %v1217 = vadd.f32 0.0, %v1216
          %v1218 = vpop.f32.mrf.mxu0
          %v1219 = vadd.f32 0.0, %v1218
          %1220 = vmatmul.bf16.gmra.mxu0 %v1120
          %v1221 = vpop.f32.mrf.mxu0
          %v1222 = vadd.f32 0.0, %v1221
          %v1223 = vpop.f32.mrf.mxu0
          %v1224 = vadd.f32 0.0, %v1223
          %1225 = vmatmul.bf16.gmra.mxu0 %v1121
          %v1226 = vpop.f32.mrf.mxu0
          %v1227 = vadd.f32 0.0, %v1226
          %v1228 = vpop.f32.mrf.mxu0
          %v1229 = vadd.f32 0.0, %v1228
          %1230 = vmatmul.bf16.gmra.mxu0 %v1122
          %v1231 = vpop.f32.mrf.mxu0
          %v1232 = vadd.f32 0.0, %v1231
          %v1233 = vpop.f32.mrf.mxu0
          %v1234 = vadd.f32 0.0, %v1233
          %1235 = vdwg.mxu0
          %v1236 = vld [vmem:[%s318] sm:$0xff]
          %v1237 = vld [vmem:[%s318 + $0x8] sm:$0xff]
          %v1238 = vld [vmem:[%s318 + $0x10] sm:$0xff]
          %v1239 = vld [vmem:[%s318 + $0x18] sm:$0xff]
          %v1240 = vld [vmem:[%s318 + $0x20] sm:$0xff]
          %v1241 = vld [vmem:[%s318 + $0x28] sm:$0xff]
          %v1242 = vld [vmem:[%s318 + $0x30] sm:$0xff]
          %v1243 = vld [vmem:[%s318 + $0x38] sm:$0xff]
          %v1244 = vld [vmem:[%s318 + $0x40] sm:$0xff]
          %v1245 = vld [vmem:[%s318 + $0x48] sm:$0xff]
          %v1246 = vld [vmem:[%s318 + $0x50] sm:$0xff]
          %v1247 = vld [vmem:[%s318 + $0x58] sm:$0xff]
          %v1248 = vld [vmem:[%s318 + $0x60] sm:$0xff]
          %v1249 = vld [vmem:[%s318 + $0x68] sm:$0xff]
          %v1250 = vld [vmem:[%s318 + $0x70] sm:$0xff]
          %v1251 = vld [vmem:[%s318 + $0x78] sm:$0xff]
          %1253 = vset.pattern.permute.xlu0 0
          %1254 = vperm.xlu0 %1253, %v1236
          %v1255 = vpop.permute.xlu0 %1254
          %1258 = vset.pattern.permute.xlu0 0
          %1259 = vperm.xlu0 %1258, %v1237
          %v1260 = vpop.permute.xlu0 %1259
          %1263 = vset.pattern.permute.xlu0 0
          %1264 = vperm.xlu0 %1263, %v1238
          %v1265 = vpop.permute.xlu0 %1264
          %1268 = vset.pattern.permute.xlu0 0
          %1269 = vperm.xlu0 %1268, %v1239
          %v1270 = vpop.permute.xlu0 %1269
          %1273 = vset.pattern.permute.xlu0 0
          %1274 = vperm.xlu0 %1273, %v1240
          %v1275 = vpop.permute.xlu0 %1274
          %1278 = vset.pattern.permute.xlu0 0
          %1279 = vperm.xlu0 %1278, %v1241
          %v1280 = vpop.permute.xlu0 %1279
          %1283 = vset.pattern.permute.xlu0 0
          %1284 = vperm.xlu0 %1283, %v1242
          %v1285 = vpop.permute.xlu0 %1284
          %1288 = vset.pattern.permute.xlu0 0
          %1289 = vperm.xlu0 %1288, %v1243
          %v1290 = vpop.permute.xlu0 %1289
          %1293 = vset.pattern.permute.xlu0 0
          %1294 = vperm.xlu0 %1293, %v1244
          %v1295 = vpop.permute.xlu0 %1294
          %1298 = vset.pattern.permute.xlu0 0
          %1299 = vperm.xlu0 %1298, %v1245
          %v1300 = vpop.permute.xlu0 %1299
          %1303 = vset.pattern.permute.xlu0 0
          %1304 = vperm.xlu0 %1303, %v1246
          %v1305 = vpop.permute.xlu0 %1304
          %1308 = vset.pattern.permute.xlu0 0
          %1309 = vperm.xlu0 %1308, %v1247
          %v1310 = vpop.permute.xlu0 %1309
          %1313 = vset.pattern.permute.xlu0 0
          %1314 = vperm.xlu0 %1313, %v1248
          %v1315 = vpop.permute.xlu0 %1314
          %1318 = vset.pattern.permute.xlu0 0
          %1319 = vperm.xlu0 %1318, %v1249
          %v1320 = vpop.permute.xlu0 %1319
          %1323 = vset.pattern.permute.xlu0 0
          %1324 = vperm.xlu0 %1323, %v1250
          %v1325 = vpop.permute.xlu0 %1324
          %1328 = vset.pattern.permute.xlu0 0
          %1329 = vperm.xlu0 %1328, %v1251
          %v1330 = vpop.permute.xlu0 %1329
          %v1332 = vmul.f32 %v1197, %v1255
          %v1333 = vmul.f32 %v1199, %v1260
          %v1334 = vmul.f32 %v1202, %v1265
          %v1335 = vmul.f32 %v1204, %v1270
          %v1336 = vmul.f32 %v1207, %v1275
          %v1337 = vmul.f32 %v1209, %v1280
          %v1338 = vmul.f32 %v1212, %v1285
          %v1339 = vmul.f32 %v1214, %v1290
          %v1340 = vmul.f32 %v1217, %v1295
          %v1341 = vmul.f32 %v1219, %v1300
          %v1342 = vmul.f32 %v1222, %v1305
          %v1343 = vmul.f32 %v1224, %v1310
          %v1344 = vmul.f32 %v1227, %v1315
          %v1345 = vmul.f32 %v1229, %v1320
          %v1346 = vmul.f32 %v1232, %v1325
          %v1347 = vmul.f32 %v1234, %v1330
          %1348 = vst [vmem:[%s298] sm:$0xff] %v1332
          %1349 = vst [vmem:[%s298 + $0x8] sm:$0xff] %v1333
          %1350 = vst [vmem:[%s298 + $0x10] sm:$0xff] %v1334
          %1351 = vst [vmem:[%s298 + $0x18] sm:$0xff] %v1335
          %1352 = vst [vmem:[%s298 + $0x20] sm:$0xff] %v1336
          %1353 = vst [vmem:[%s298 + $0x28] sm:$0xff] %v1337
          %1354 = vst [vmem:[%s298 + $0x30] sm:$0xff] %v1338
          %1355 = vst [vmem:[%s298 + $0x38] sm:$0xff] %v1339
          %1356 = vst [vmem:[%s298 + $0x40] sm:$0xff] %v1340
          %1357 = vst [vmem:[%s298 + $0x48] sm:$0xff] %v1341
          %1358 = vst [vmem:[%s298 + $0x50] sm:$0xff] %v1342
          %1359 = vst [vmem:[%s298 + $0x58] sm:$0xff] %v1343
          %1360 = vst [vmem:[%s298 + $0x60] sm:$0xff] %v1344
          %1361 = vst [vmem:[%s298 + $0x68] sm:$0xff] %v1345
          %1362 = vst [vmem:[%s298 + $0x70] sm:$0xff] %v1346
          %1363 = vst [vmem:[%s298 + $0x78] sm:$0xff] %v1347
        $region52: #{tpu_custom_call.1} parent=35 // pred_fallthru
          _
        %s1364 = sand.u32 %s167, 1
        %s1365 = scalar_lea.sflag [#allocation8], %s1364
        %s1366 = sand.u32 %s167, 1
        %s1367 = smul.addr %s1366, 128
        %s1368 = scalar_lea.vmem [#allocation9], %s1367
        // Predicated region
        $region53: #{tpu_custom_call.1} parent=35 // pred_check
          %p1369 = pneg %p177
        $region54: #{tpu_custom_call.1} parent=35 // pred_check_branch
          %1371 = sbr.rel (%p1369) target = $region56
        $region55: #{tpu_custom_call.1} parent=35 // pred_region
          %s1372 = smul.u32 16, %s40
          %1374 = vsyncadd %s1365, 0
          %s1375 = smul.addr %s1372, 8
          %s1376 = scalar_lea.hbm %s6, %s1375
          %s1377 = sshll.u32 %s1368, 4
          %s1378 = int_to_ptr.vmem [resolvable:$true] %s1377
          %s1379 = sshll.u32 %s1376, 4
          %s1380 = int_to_ptr.hbm [resolvable:$true] %s1379
          %1385 = dma.vmem_to_hbm [thread:$0]  %s1378, 2048, %s1380, %s1365, 128, 128, 8
        $region56: #{tpu_custom_call.1} parent=35 // pred_fallthru
          _
      $region36: #{tpu_custom_call.1} parent=5 // pred_fallthru
        _
      %p1386 = scmp.le.s32.totalorder 2, %s31
      // Predicated region
      $region57: #{tpu_custom_call.1} parent=5 // pred_check
        %p1387 = pneg %p1386
      $region58: #{tpu_custom_call.1} parent=5 // pred_check_branch
        %1389 = sbr.rel (%p1387) target = $region60
      $region59: #{tpu_custom_call.1} parent=5 // pred_region
        %s1390 = ssub.s32 %s31, 2
        // Predicated region
        $region61: #{tpu_custom_call.1} parent=59 // pred_check
          %p1391 = pneg %p183
        $region62: #{tpu_custom_call.1} parent=59 // pred_check_branch
          %1393 = sbr.rel (%p1391) target = $region64
        $region63: #{tpu_custom_call.1} parent=59 // pred_region
          %s1394 = sand.u32 %s168, 1
          %s1395 = scalar_lea.sflag [#allocation8], %s1394
          %s1396 = sand.u32 %s168, 1
          %s1397 = smul.addr %s1396, 128
          %s1398 = scalar_lea.vmem [#allocation9], %s1397
          %1400 = dma.done %s1395, 2048
        $region64: #{tpu_custom_call.1} parent=59 // pred_fallthru
          _
      $region60: #{tpu_custom_call.1} parent=5 // pred_fallthru
        _
    $region6: #{tpu_custom_call.1} parent=1 // loop_footer
      %s35 = sadd.s32 1, %s31
    $region7: #{tpu_custom_call.1} parent=1 // loop_footer_branch
      %30 = sbr.rel target = $region3
    $region8: #{tpu_custom_call.1} parent=1 // loop_exit
      _
    %1401 = vsyncpa [#allocation7], 1
    %s1402 = scalar_lea.sflag [#allocation7], 1
    %1403 = vsyncpa %s1402, 1
    %1404 = vsyncpa [#allocation8], 1
    %s1405 = scalar_lea.sflag [#allocation8], 1
    %1406 = vsyncpa %s1405, 1

</llo_original>
